<compile_context>
chip_gen: v5e
topology: v5e:2x2
jax: 0.10.0
libtpu: 0.0.40
codegen_flags: <defaults>
</compile_context>

<pallas_src>
import jax
import jax.numpy as jnp
from jax.experimental import pallas as pl
from jax.experimental.pallas import tpu as pltpu


def mlp_kernel(x_ref, w1t_ref, b1_ref, w2t_ref, b2_ref, w3_ref, b3_ref, o_ref):
    # x arrives batch-major (TB, 2); one in-kernel transpose (XLU slot) puts
    # the batch on the 128-wide lane axis for everything downstream.
    xt = jnp.transpose(x_ref[...])                       # (2, TB)
    w1t = w1t_ref[...]                                   # (H, 2)

    # Layer 1 (in=2): two VPU rank-1 updates (no degenerate K=2 MXU matmul).
    h = (w1t[:, 0:1] * xt[0:1, :]
         + w1t[:, 1:2] * xt[1:2, :]
         + b1_ref[...])                                  # (H, TB)
    h = jnp.maximum(h, 0.0)

    # Layer 2: the only real matmul -> MXU.  h^T = W2^T @ h^T + b2^T
    # TODO(synk): cast W2^T / h to bf16 here if H is ever scaled well past 32.
    h = jnp.dot(w2t_ref[...], h,
                preferred_element_type=jnp.float32,
                precision=jax.lax.Precision.HIGHEST)
    h = jnp.maximum(h + b2_ref[...], 0.0)                # (H, TB)

    # Layer 3 (out=1): VPU multiply + sublane (XLU) reduce; lane-dense row.
    z = jnp.sum(w3_ref[...] * h, axis=0, keepdims=True) + b3_ref[0]   # (1, TB)
    o_ref[...] = jax.nn.sigmoid(z).astype(o_ref.dtype)


def _pick_batch_tile(B, max_block_b):
    """Lane-aligned (multiple of 128) batch tile, as large as max_block_b,
    but keeping >= 2 grid tiles whenever B allows (v7x has 2 TensorCores)."""
    tb = min(max_block_b, max(128, pl.next_power_of_2(max(B, 1))))
    if B > 128 and pl.cdiv(B, tb) < 2:
        tb = max(128, tb // 2)
    return tb


def network_forward(x, params, *, max_block_b=2048):
    """x: (B, 2) float32. Returns (B, 1) float32 (sigmoid outputs)."""
    w1, b1, w2, b2, w3, b3 = params
    B, F = x.shape
    H = w1.shape[1]

    TB = _pick_batch_tile(B, max_block_b)
    n_tiles = pl.cdiv(B, TB)
    B_pad = n_tiles * TB          # output padded to full lane tiles; sliced below

    const2 = lambda i: (0, 0)     # weights/biases stay resident across the grid

    out_t = pl.pallas_call(
        mlp_kernel,
        out_shape=jax.ShapeDtypeStruct((1, B_pad), jnp.float32),
        grid=(n_tiles,),
        in_specs=[
            pl.BlockSpec((TB, F), lambda i: (i, 0)),            # x batch tile (no host transpose/pad)
            pl.BlockSpec((H, F), const2),                       # W1^T
            pl.BlockSpec((H, 1), const2),                       # b1 (column)
            pl.BlockSpec((H, H), const2),                       # W2^T
            pl.BlockSpec((H, 1), const2),                       # b2 (column)
            pl.BlockSpec((H, 1), const2),                       # W3 (column)
            pl.BlockSpec(memory_space=pltpu.MemorySpace.SMEM),  # b3 scalar
        ],
        out_specs=pl.BlockSpec((1, TB), lambda i: (0, i)),
        compiler_params=pltpu.CompilerParams(
            dimension_semantics=("parallel",)),
    )(x, w1.T, b1.reshape(H, 1), w2.T, b2.reshape(H, 1), w3, b3)

    return out_t[0, :B].reshape(B, 1)


def init_params(key, hidden):
    # Matches torch init: 2 * (rand(shape) - 0.5)  == Uniform(-1, 1)
    ks = jax.random.split(key, 6)
    u = lambda k, shape: jax.random.uniform(k, shape, jnp.float32, -1.0, 1.0)
    w1 = u(ks[0], (2, hidden))
    b1 = u(ks[1], (hidden,))
    w2 = u(ks[2], (hidden, hidden))
    b2 = u(ks[3], (hidden,))
    w3 = u(ks[4], (hidden, 1))
    b3 = u(ks[5], (1,))
    return (w1, b1, w2, b2, w3, b3)


if __name__ == "__main__":
    key = jax.random.PRNGKey(0)
    k_x, k_p = jax.random.split(key)

    batch, hidden = 8, 32
    x = jax.random.uniform(k_x, (batch, 2), jnp.float32, -1.0, 1.0)
    params = init_params(k_p, hidden)

    out = network_forward(x, params)
    jax.block_until_ready(out)

    # Reference check in plain JAX (same math, f32 matmul path).
    w1, b1, w2, b2, w3, b3 = params
    hp = jax.lax.Precision.HIGHEST
    h = jnp.maximum(jnp.dot(x, w1, precision=hp) + b1, 0.0)
    h = jnp.maximum(jnp.dot(h, w2, precision=hp) + b2, 0.0)
    ref = jax.nn.sigmoid(jnp.dot(h, w3, precision=hp) + b3)
    assert out.shape == (batch, 1)
    assert jnp.allclose(out, ref, atol=1e-5, rtol=1e-5)

    print("KERNEL_OK")
</pallas_src>

<mosaic_0001>
module attributes {stable_mosaic.version = 11 : i64} {
  func.func @mlp_kernel(%arg0: i32, %arg1: memref<128x2xf32, #tpu.memory_space<vmem>>, %arg2: memref<32x2xf32, #tpu.memory_space<vmem>>, %arg3: memref<32x1xf32, #tpu.memory_space<vmem>>, %arg4: memref<32x32xf32, #tpu.memory_space<vmem>>, %arg5: memref<32x1xf32, #tpu.memory_space<vmem>>, %arg6: memref<32x1xf32, #tpu.memory_space<vmem>>, %arg7: memref<1xf32, #tpu.memory_space<smem>>, %arg8: memref<1x128xf32, #tpu.memory_space<vmem>>) attributes {dimension_semantics = [#tpu.dimension_semantics<parallel>], iteration_bounds = array<i64: 1>, scalar_prefetch = 0 : i64, scratch_operands = 0 : i64, tpu.core_type = #tpu.core_type<tc>, window_params = [{transform_indices = @transform_0, window_bounds = array<i64: 128, 2>}, {pipeline_mode = #tpu.pipeline_mode<synchronous>, transform_indices = @transform_1, window_bounds = array<i64: 32, 2>}, {pipeline_mode = #tpu.pipeline_mode<synchronous>, transform_indices = @transform_2, window_bounds = array<i64: 32, 1>}, {pipeline_mode = #tpu.pipeline_mode<synchronous>, transform_indices = @transform_3, window_bounds = array<i64: 32, 32>}, {pipeline_mode = #tpu.pipeline_mode<synchronous>, transform_indices = @transform_4, window_bounds = array<i64: 32, 1>}, {pipeline_mode = #tpu.pipeline_mode<synchronous>, transform_indices = @transform_5, window_bounds = array<i64: 32, 1>}, {transform_indices = @transform_6, window_bounds = array<i64: 1>}, {transform_indices = @transform_7, window_bounds = array<i64: 1, 128>}]} {
    %c0 = arith.constant 0 : index
    %c0_0 = arith.constant 0 : index
    %0 = vector.load %arg1[%c0, %c0_0] : memref<128x2xf32, #tpu.memory_space<vmem>>, vector<128x2xf32>
    %1 = tpu.transpose %0, [1, 0] : vector<128x2xf32> -> vector<2x128xf32>
    %c0_1 = arith.constant 0 : index
    %c0_2 = arith.constant 0 : index
    %2 = vector.load %arg2[%c0_1, %c0_2] : memref<32x2xf32, #tpu.memory_space<vmem>>, vector<32x2xf32>
    %3 = vector.extract_strided_slice %2 {offsets = [0, 0], sizes = [32, 1], strides = [1, 1]} : vector<32x2xf32> to vector<32x1xf32>
    %4 = vector.extract_strided_slice %1 {offsets = [0, 0], sizes = [1, 128], strides = [1, 1]} : vector<2x128xf32> to vector<1x128xf32>
    %5 = vector.broadcast %3 : vector<32x1xf32> to vector<32x128xf32>
    %6 = vector.broadcast %4 : vector<1x128xf32> to vector<32x128xf32>
    %7 = arith.mulf %5, %6 : vector<32x128xf32>
    %8 = vector.extract_strided_slice %2 {offsets = [0, 1], sizes = [32, 1], strides = [1, 1]} : vector<32x2xf32> to vector<32x1xf32>
    %9 = vector.extract_strided_slice %1 {offsets = [1, 0], sizes = [1, 128], strides = [1, 1]} : vector<2x128xf32> to vector<1x128xf32>
    %10 = vector.broadcast %8 : vector<32x1xf32> to vector<32x128xf32>
    %11 = vector.broadcast %9 : vector<1x128xf32> to vector<32x128xf32>
    %12 = arith.mulf %10, %11 : vector<32x128xf32>
    %13 = arith.addf %7, %12 : vector<32x128xf32>
    %c0_3 = arith.constant 0 : index
    %c0_4 = arith.constant 0 : index
    %14 = vector.load %arg3[%c0_3, %c0_4] : memref<32x1xf32, #tpu.memory_space<vmem>>, vector<32x1xf32>
    %15 = vector.broadcast %14 : vector<32x1xf32> to vector<32x128xf32>
    %16 = arith.addf %13, %15 : vector<32x128xf32>
    %cst = arith.constant 0.000000e+00 : f32
    %17 = vector.broadcast %cst : f32 to vector<32x128xf32>
    %18 = arith.maximumf %16, %17 : vector<32x128xf32>
    %c0_5 = arith.constant 0 : index
    %c0_6 = arith.constant 0 : index
    %19 = vector.load %arg4[%c0_5, %c0_6] : memref<32x32xf32, #tpu.memory_space<vmem>>, vector<32x32xf32>
    %cst_7 = arith.constant dense<0.000000e+00> : vector<32x128xf32>
    %20 = tpu.matmul %19, %18, %cst_7 {dimension_numbers = #tpu.dot_dimension_numbers<[1], [0], [0], [1], [0, 0, 1, 1], [], []>, precision = #tpu.contract_precision<fp32>} : vector<32x32xf32>, vector<32x128xf32>, vector<32x128xf32> -> vector<32x128xf32>
    %c0_8 = arith.constant 0 : index
    %c0_9 = arith.constant 0 : index
    %21 = vector.load %arg5[%c0_8, %c0_9] : memref<32x1xf32, #tpu.memory_space<vmem>>, vector<32x1xf32>
    %22 = vector.broadcast %21 : vector<32x1xf32> to vector<32x128xf32>
    %23 = arith.addf %20, %22 : vector<32x128xf32>
    %cst_10 = arith.constant 0.000000e+00 : f32
    %24 = vector.broadcast %cst_10 : f32 to vector<32x128xf32>
    %25 = arith.maximumf %23, %24 : vector<32x128xf32>
    %c0_11 = arith.constant 0 : index
    %c0_12 = arith.constant 0 : index
    %26 = vector.load %arg6[%c0_11, %c0_12] : memref<32x1xf32, #tpu.memory_space<vmem>>, vector<32x1xf32>
    %27 = vector.broadcast %26 : vector<32x1xf32> to vector<32x128xf32>
    %28 = arith.mulf %27, %25 : vector<32x128xf32>
    %cst_13 = arith.constant dense<0.000000e+00> : vector<128xf32>
    %29 = vector.multi_reduction <add>, %28, %cst_13 [0] : vector<32x128xf32> to vector<128xf32>
    %30 = vector.shape_cast %29 : vector<128xf32> to vector<1x128xf32>
    %c0_14 = arith.constant 0 : index
    %31 = memref.load %arg7[%c0_14] : memref<1xf32, #tpu.memory_space<smem>>
    %32 = vector.broadcast %31 : f32 to vector<1x128xf32>
    %33 = arith.addf %30, %32 : vector<1x128xf32>
    %34 = arith.negf %33 : vector<1x128xf32>
    %35 = math.exp %34 : vector<1x128xf32>
    %cst_15 = arith.constant 1.000000e+00 : f32
    %36 = vector.broadcast %cst_15 : f32 to vector<1x128xf32>
    %37 = arith.addf %36, %35 : vector<1x128xf32>
    %38 = arith.divf %36, %37 : vector<1x128xf32>
    %c0_16 = arith.constant 0 : index
    %c0_17 = arith.constant 0 : index
    %39 = vector.load %arg8[%c0_16, %c0_17] : memref<1x128xf32, #tpu.memory_space<vmem>>, vector<1x128xf32>
    tpu.vector_store %arg8[%c0_16, %c0_17], %38 {strides = array<i32>} : memref<1x128xf32, #tpu.memory_space<vmem>>, vector<1x128xf32>,
    return
  }
  func.func @transform_0(%arg0: i32) -> (i32, i32) {
    %c0_i32 = arith.constant 0 : i32
    %c0_i32_0 = arith.constant 0 : i32
    return %arg0, %c0_i32 : i32, i32
  }
  func.func @transform_1(%arg0: i32) -> (i32, i32) {
    %c0_i32 = arith.constant 0 : i32
    %c0_i32_0 = arith.constant 0 : i32
    %c0_i32_1 = arith.constant 0 : i32
    return %c0_i32, %c0_i32_0 : i32, i32
  }
  func.func @transform_2(%arg0: i32) -> (i32, i32) {
    %c0_i32 = arith.constant 0 : i32
    %c0_i32_0 = arith.constant 0 : i32
    %c0_i32_1 = arith.constant 0 : i32
    return %c0_i32, %c0_i32_0 : i32, i32
  }
  func.func @transform_3(%arg0: i32) -> (i32, i32) {
    %c0_i32 = arith.constant 0 : i32
    %c0_i32_0 = arith.constant 0 : i32
    %c0_i32_1 = arith.constant 0 : i32
    return %c0_i32, %c0_i32_0 : i32, i32
  }
  func.func @transform_4(%arg0: i32) -> (i32, i32) {
    %c0_i32 = arith.constant 0 : i32
    %c0_i32_0 = arith.constant 0 : i32
    %c0_i32_1 = arith.constant 0 : i32
    return %c0_i32, %c0_i32_0 : i32, i32
  }
  func.func @transform_5(%arg0: i32) -> (i32, i32) {
    %c0_i32 = arith.constant 0 : i32
    %c0_i32_0 = arith.constant 0 : i32
    %c0_i32_1 = arith.constant 0 : i32
    return %c0_i32, %c0_i32_0 : i32, i32
  }
  func.func @transform_6(%arg0: i32) -> i32 {
    %c0_i32 = arith.constant 0 : i32
    %c0_i32_0 = arith.constant 0 : i32
    return %c0_i32 : i32
  }
  func.func @transform_7(%arg0: i32) -> (i32, i32) {
    %c0_i32 = arith.constant 0 : i32
    %c0_i32_0 = arith.constant 0 : i32
    return %c0_i32, %arg0 : i32, i32
  }
}

</mosaic_0001>

<llo_original>
// kernel: tpu_custom_call.1
$region0: #{tpu_custom_call.1}
  #allocation0 [shape = 'u32[]', space=smem, size = 0x4, offset = 0x4, fixed_abs, tag = 'smem constant byte address 0x4 - core index']
  #allocation1 [shape = 'u32[72,128]{1,0:T(1,128)}', space=vmem, size = 0x9000, scoped, tag = 'internal scratch']
  #allocation2 [shape = 'f32[1]{0:T(128)S(6)}', space=smem, size = 0x200, scoped, tag = 'scoped memory for tpu_custom_call.1']
  %s0 = inlined_call_operand.vmem [shape: f32[8,2], index: 0, kind: input, shape index: {}]
  %s1 = inlined_call_operand.vmem [shape: f32[32,2], index: 1, kind: input, shape index: {}]
  %s2 = inlined_call_operand.vmem [shape: f32[32,1], index: 2, kind: input, shape index: {}]
  %s3 = inlined_call_operand.vmem [shape: f32[32,32], index: 3, kind: input, shape index: {}]
  %s4 = inlined_call_operand.vmem [shape: f32[32,1], index: 4, kind: input, shape index: {}]
  %s5 = inlined_call_operand.vmem [shape: f32[32,1], index: 5, kind: input, shape index: {}]
  %s6 = inlined_call_operand.<no memory space> [shape: f32[1], index: 6, kind: input, shape index: {}]
  %s7 = inlined_call_operand.hbm [shape: f32[1,128], index: 7, kind: output, shape index: {}]
  %s8 = sld [smem:[#allocation0]]
  $region38: #{tpu_custom_call.1} parent=0
    _
  %s10 = ssub.s32 1, %s8
  %s11 = scalar_select 0, %s10, %s8
  %12 = sst [smem:[#allocation2]] %s6
  $region1: #{tpu_custom_call.1} parent=0
    #allocation3 [shape = 'u8[512]{0}', space=vmem, size = 0x400, scoped, tag = 'output window, operand 0, single buffered']
    #allocation4 [shape = 's32[1]{0}', space=sflag, size = 0x4, scoped, tag = 'scoped memory for tpu_custom_call.1']
    %13 = vsyncpa [#allocation4], 0
    // Predicated region
    $region2: #{tpu_custom_call.1} parent=1 // pred_check
      _
    $region3: #{tpu_custom_call.1} parent=1 // pred_check_branch
      %15 = sbr.rel (0) target = $region5
    $region4: #{tpu_custom_call.1} parent=1 // pred_region
      _
    $region5: #{tpu_custom_call.1} parent=1 // pred_fallthru
      _
    // Predicated region
    $region6: #{tpu_custom_call.1} parent=1 // pred_check
      _
    $region7: #{tpu_custom_call.1} parent=1 // pred_check_branch
      %17 = sbr.rel (0) target = $region9
    $region8: #{tpu_custom_call.1} parent=1 // pred_region
      _
    $region9: #{tpu_custom_call.1} parent=1 // pred_fallthru
      _
    // Predicated region
    $region10: #{tpu_custom_call.1} parent=1 // pred_check
      _
    $region11: #{tpu_custom_call.1} parent=1 // pred_check_branch
      %19 = sbr.rel (0) target = $region13
    $region12: #{tpu_custom_call.1} parent=1 // pred_region
      _
    $region13: #{tpu_custom_call.1} parent=1 // pred_fallthru
      _
    // Predicated region
    $region14: #{tpu_custom_call.1} parent=1 // pred_check
      _
    $region15: #{tpu_custom_call.1} parent=1 // pred_check_branch
      %21 = sbr.rel (0) target = $region17
    $region16: #{tpu_custom_call.1} parent=1 // pred_region
      _
    $region17: #{tpu_custom_call.1} parent=1 // pred_fallthru
      _
    // Predicated region
    $region18: #{tpu_custom_call.1} parent=1 // pred_check
      _
    $region19: #{tpu_custom_call.1} parent=1 // pred_check_branch
      %23 = sbr.rel (0) target = $region21
    $region20: #{tpu_custom_call.1} parent=1 // pred_region
      _
    $region21: #{tpu_custom_call.1} parent=1 // pred_fallthru
      _
    // Predicated region
    $region22: #{tpu_custom_call.1} parent=1 // pred_check
      _
    $region23: #{tpu_custom_call.1} parent=1 // pred_check_branch
      %25 = sbr.rel (0) target = $region25
    $region24: #{tpu_custom_call.1} parent=1 // pred_region
      _
    $region25: #{tpu_custom_call.1} parent=1 // pred_fallthru
      _
    // Predicated region
    $region26: #{tpu_custom_call.1} parent=1 // pred_check
      _
    $region27: #{tpu_custom_call.1} parent=1 // pred_check_branch
      %27 = sbr.rel (0) target = $region29
    $region28: #{tpu_custom_call.1} parent=1 // pred_region
      _
    $region29: #{tpu_custom_call.1} parent=1 // pred_fallthru
      _
    %v28 = vld [vmem:[%s0] sm:$0xff]
    %v29 = vld [vmem:[%s0 + $0x8] sm:$0xff]
    %v30 = vld [vmem:[%s0 + $0x10] sm:$0xff]
    %v31 = vld [vmem:[%s0 + $0x18] sm:$0xff]
    %v32 = vld [vmem:[%s0 + $0x20] sm:$0xff]
    %v33 = vld [vmem:[%s0 + $0x28] sm:$0xff]
    %v34 = vld [vmem:[%s0 + $0x30] sm:$0xff]
    %v35 = vld [vmem:[%s0 + $0x38] sm:$0xff]
    %v36 = vld [vmem:[%s0 + $0x40] sm:$0xff]
    %v37 = vld [vmem:[%s0 + $0x48] sm:$0xff]
    %v38 = vld [vmem:[%s0 + $0x50] sm:$0xff]
    %v39 = vld [vmem:[%s0 + $0x58] sm:$0xff]
    %v40 = vld [vmem:[%s0 + $0x60] sm:$0xff]
    %v41 = vld [vmem:[%s0 + $0x68] sm:$0xff]
    %v42 = vld [vmem:[%s0 + $0x70] sm:$0xff]
    %v43 = vld [vmem:[%s0 + $0x78] sm:$0xff]
    %44 = vxpose.xlu0.b32.start [1/16] %v28, 128
    %45 = vxpose.xlu0.b32.cont [2/16] %v29, 128
    %46 = vxpose.xlu0.b32.cont [3/16] %v30, 128
    %47 = vxpose.xlu0.b32.cont [4/16] %v31, 128
    %48 = vxpose.xlu0.b32.cont [5/16] %v32, 128
    %49 = vxpose.xlu0.b32.cont [6/16] %v33, 128
    %50 = vxpose.xlu0.b32.cont [7/16] %v34, 128
    %51 = vxpose.xlu0.b32.cont [8/16] %v35, 128
    %52 = vxpose.xlu0.b32.cont [9/16] %v36, 128
    %53 = vxpose.xlu0.b32.cont [10/16] %v37, 128
    %54 = vxpose.xlu0.b32.cont [11/16] %v38, 128
    %55 = vxpose.xlu0.b32.cont [12/16] %v39, 128
    %56 = vxpose.xlu0.b32.cont [13/16] %v40, 128
    %57 = vxpose.xlu0.b32.cont [14/16] %v41, 128
    %58 = vxpose.xlu0.b32.cont [15/16] %v42, 128
    %59 = vxpose.xlu0.b32.end [16/16] %v43, 128
    %v60 = vpop.trf.xlu0
    %v61 = vpop.trf.xlu0
    %v62 = vpop.trf.xlu0
    %v63 = vpop.trf.xlu0
    %v64 = vpop.trf.xlu0
    %v65 = vpop.trf.xlu0
    %v66 = vpop.trf.xlu0
    %v67 = vpop.trf.xlu0
    %v68 = vpop.trf.xlu0
    %v69 = vpop.trf.xlu0
    %v70 = vpop.trf.xlu0
    %v71 = vpop.trf.xlu0
    %v72 = vpop.trf.xlu0
    %v73 = vpop.trf.xlu0
    %v74 = vpop.trf.xlu0
    %v75 = vpop.trf.xlu0
    %v76 = vld [vmem:[%s1] sm:$0xff]
    %v77 = vld [vmem:[%s1 + $0x8] sm:$0xff]
    %v78 = vld [vmem:[%s1 + $0x10] sm:$0xff]
    %v79 = vld [vmem:[%s1 + $0x18] sm:$0xff]
    %81 = vset.pattern.permute.xlu0 0
    %82 = vperm.xlu0 %81, %v76
    %v83 = vpop.permute.xlu0 %82
    %86 = vset.pattern.permute.xlu0 0
    %87 = vperm.xlu0 %86, %v77
    %v88 = vpop.permute.xlu0 %87
    %91 = vset.pattern.permute.xlu0 0
    %92 = vperm.xlu0 %91, %v78
    %v93 = vpop.permute.xlu0 %92
    %96 = vset.pattern.permute.xlu0 0
    %97 = vperm.xlu0 %96, %v79
    %v98 = vpop.permute.xlu0 %97
    %v100 = vperm.slane %v60, 0
    %v101 = vmul.f32 %v83, %v100
    %v102 = vmul.f32 %v88, %v100
    %v103 = vmul.f32 %v93, %v100
    %v104 = vmul.f32 %v98, %v100
    %105 = vset.pattern.permute.xlu0 1
    %106 = vperm.xlu0 %105, %v76
    %v107 = vpop.permute.xlu0 %106
    %109 = vset.pattern.permute.xlu0 1
    %110 = vperm.xlu0 %109, %v77
    %v111 = vpop.permute.xlu0 %110
    %113 = vset.pattern.permute.xlu0 1
    %114 = vperm.xlu0 %113, %v78
    %v115 = vpop.permute.xlu0 %114
    %117 = vset.pattern.permute.xlu0 1
    %118 = vperm.xlu0 %117, %v79
    %v119 = vpop.permute.xlu0 %118
    %v121 = vperm.slane %v60, 1
    %v122 = vmul.f32 %v107, %v121
    %v123 = vmul.f32 %v111, %v121
    %v124 = vmul.f32 %v115, %v121
    %v125 = vmul.f32 %v119, %v121
    %v126 = vadd.f32 %v101, %v122
    %v127 = vadd.f32 %v102, %v123
    %v128 = vadd.f32 %v103, %v124
    %v129 = vadd.f32 %v104, %v125
    %v130 = vld [vmem:[%s2] sm:$0xff]
    %v131 = vld [vmem:[%s2 + $0x8] sm:$0xff]
    %v132 = vld [vmem:[%s2 + $0x10] sm:$0xff]
    %v133 = vld [vmem:[%s2 + $0x18] sm:$0xff]
    %135 = vset.pattern.permute.xlu0 0
    %136 = vperm.xlu0 %135, %v130
    %v137 = vpop.permute.xlu0 %136
    %140 = vset.pattern.permute.xlu0 0
    %141 = vperm.xlu0 %140, %v131
    %v142 = vpop.permute.xlu0 %141
    %145 = vset.pattern.permute.xlu0 0
    %146 = vperm.xlu0 %145, %v132
    %v147 = vpop.permute.xlu0 %146
    %150 = vset.pattern.permute.xlu0 0
    %151 = vperm.xlu0 %150, %v133
    %v152 = vpop.permute.xlu0 %151
    %v154 = vadd.f32 %v126, %v137
    %v155 = vadd.f32 %v127, %v142
    %v156 = vadd.f32 %v128, %v147
    %v157 = vadd.f32 %v129, %v152
    %v158 = vmax.f32 %v154, 0.0
    %v159 = vmax.f32 %v155, 0.0
    %v160 = vmax.f32 %v156, 0.0
    %v161 = vmax.f32 %v157, 0.0
    %v162 = vld [vmem:[%s3] sm:$0xff]
    %v163 = vld [vmem:[%s3 + $0x8] sm:$0xff]
    %v164 = vld [vmem:[%s3 + $0x10] sm:$0xff]
    %v165 = vld [vmem:[%s3 + $0x18] sm:$0xff]
    %v166 = vld [vmem:[%s4] sm:$0xff]
    %v167 = vld [vmem:[%s4 + $0x8] sm:$0xff]
    %v168 = vld [vmem:[%s4 + $0x10] sm:$0xff]
    %v169 = vld [vmem:[%s4 + $0x18] sm:$0xff]
    %171 = vset.pattern.permute.xlu0 0
    %172 = vperm.xlu0 %171, %v166
    %v173 = vpop.permute.xlu0 %172
    %176 = vset.pattern.permute.xlu0 0
    %177 = vperm.xlu0 %176, %v167
    %v178 = vpop.permute.xlu0 %177
    %181 = vset.pattern.permute.xlu0 0
    %182 = vperm.xlu0 %181, %v168
    %v183 = vpop.permute.xlu0 %182
    %186 = vset.pattern.permute.xlu0 0
    %187 = vperm.xlu0 %186, %v169
    %v188 = vpop.permute.xlu0 %187
    %vm190 = vcmask 261120
    %v192 = vsel %vm190, %v162, 0
    %v195 = vsel %vm190, %v163, 0
    %v198 = vsel %vm190, %v164, 0
    %v201 = vsel %vm190, %v165, 0
    %203 = vmatpush.msra.mxu0 0.0
    %204 = vmatpush.msra.mxu0 0.0
    %205 = vmatpush.msra.mxu0 0.0
    %206 = vmatpush.msra.mxu0 0.0
    %207 = vmatpush.msra.mxu0 0.0
    %208 = vmatpush.msra.mxu0 0.0
    %209 = vmatpush.msra.mxu0 0.0
    %210 = vmatpush.msra.mxu0 0.0
    %211 = vmatpush.msra.mxu0 0.0
    %212 = vmatpush.msra.mxu0 0.0
    %213 = vmatpush.msra.mxu0 0.0
    %214 = vmatpush.msra.mxu0 0.0
    %v215 = vand.u32 %v161, 4294901760
    %216 = vmatpush.msra.mxu0 %v215
    %v217 = vand.u32 %v160, 4294901760
    %218 = vmatpush.msra.mxu0 %v217
    %v219 = vand.u32 %v159, 4294901760
    %220 = vmatpush.msra.mxu0 %v219
    %v221 = vand.u32 %v158, 4294901760
    %222 = vmatpush.msra.mxu0 %v221
    %v223 = vand.u32 %v192, 4294901760
    %v224 = vsub.f32 %v192, %v223
    %v225 = vand.u32 %v224, 4294901760
    %v226 = vsub.f32 %v224, %v225
    %v227 = vand.u32 %v226, 4294901760
    %228 = vmatmul.f32.gmra.mxu0 %v227
    %v229 = vpop.f32.mrf.mxu0
    %v230 = vadd.f32 %v173, %v229
    %v231 = vand.u32 %v195, 4294901760
    %v232 = vsub.f32 %v195, %v231
    %v233 = vand.u32 %v232, 4294901760
    %v234 = vsub.f32 %v232, %v233
    %v235 = vand.u32 %v234, 4294901760
    %236 = vmatmul.f32.gmra.mxu0 %v235
    %v237 = vpop.f32.mrf.mxu0
    %v238 = vadd.f32 %v178, %v237
    %v239 = vand.u32 %v198, 4294901760
    %v240 = vsub.f32 %v198, %v239
    %v241 = vand.u32 %v240, 4294901760
    %v242 = vsub.f32 %v240, %v241
    %v243 = vand.u32 %v242, 4294901760
    %244 = vmatmul.f32.gmra.mxu0 %v243
    %v245 = vpop.f32.mrf.mxu0
    %v246 = vadd.f32 %v183, %v245
    %v247 = vand.u32 %v201, 4294901760
    %v248 = vsub.f32 %v201, %v247
    %v249 = vand.u32 %v248, 4294901760
    %v250 = vsub.f32 %v248, %v249
    %v251 = vand.u32 %v250, 4294901760
    %252 = vmatmul.f32.gmra.mxu0 %v251
    %v253 = vpop.f32.mrf.mxu0
    %v254 = vadd.f32 %v188, %v253
    %255 = vdwg.mxu0
    %256 = vmatpush.msra.mxu0 0.0
    %257 = vmatpush.msra.mxu0 0.0
    %258 = vmatpush.msra.mxu0 0.0
    %259 = vmatpush.msra.mxu0 0.0
    %260 = vmatpush.msra.mxu0 0.0
    %261 = vmatpush.msra.mxu0 0.0
    %262 = vmatpush.msra.mxu0 0.0
    %263 = vmatpush.msra.mxu0 0.0
    %264 = vmatpush.msra.mxu0 0.0
    %265 = vmatpush.msra.mxu0 0.0
    %266 = vmatpush.msra.mxu0 0.0
    %267 = vmatpush.msra.mxu0 0.0
    %v268 = vand.u32 %v161, 4294901760
    %v269 = vsub.f32 %v161, %v268
    %v270 = vand.u32 %v269, 4294901760
    %v271 = vsub.f32 %v269, %v270
    %v272 = vand.u32 %v271, 4294901760
    %273 = vmatpush.msra.mxu0 %v272
    %v274 = vand.u32 %v160, 4294901760
    %v275 = vsub.f32 %v160, %v274
    %v276 = vand.u32 %v275, 4294901760
    %v277 = vsub.f32 %v275, %v276
    %v278 = vand.u32 %v277, 4294901760
    %279 = vmatpush.msra.mxu0 %v278
    %v280 = vand.u32 %v159, 4294901760
    %v281 = vsub.f32 %v159, %v280
    %v282 = vand.u32 %v281, 4294901760
    %v283 = vsub.f32 %v281, %v282
    %v284 = vand.u32 %v283, 4294901760
    %285 = vmatpush.msra.mxu0 %v284
    %v286 = vand.u32 %v158, 4294901760
    %v287 = vsub.f32 %v158, %v286
    %v288 = vand.u32 %v287, 4294901760
    %v289 = vsub.f32 %v287, %v288
    %v290 = vand.u32 %v289, 4294901760
    %291 = vmatpush.msra.mxu0 %v290
    %v292 = vand.u32 %v192, 4294901760
    %293 = vmatmul.f32.gmra.mxu0 %v292
    %v294 = vpop.f32.mrf.mxu0
    %v295 = vadd.f32 %v230, %v294
    %v296 = vand.u32 %v195, 4294901760
    %297 = vmatmul.f32.gmra.mxu0 %v296
    %v298 = vpop.f32.mrf.mxu0
    %v299 = vadd.f32 %v238, %v298
    %v300 = vand.u32 %v198, 4294901760
    %301 = vmatmul.f32.gmra.mxu0 %v300
    %v302 = vpop.f32.mrf.mxu0
    %v303 = vadd.f32 %v246, %v302
    %v304 = vand.u32 %v201, 4294901760
    %305 = vmatmul.f32.gmra.mxu0 %v304
    %v306 = vpop.f32.mrf.mxu0
    %v307 = vadd.f32 %v254, %v306
    %308 = vdwg.mxu0
    %309 = vmatpush.msra.mxu0 0.0
    %310 = vmatpush.msra.mxu0 0.0
    %311 = vmatpush.msra.mxu0 0.0
    %312 = vmatpush.msra.mxu0 0.0
    %313 = vmatpush.msra.mxu0 0.0
    %314 = vmatpush.msra.mxu0 0.0
    %315 = vmatpush.msra.mxu0 0.0
    %316 = vmatpush.msra.mxu0 0.0
    %317 = vmatpush.msra.mxu0 0.0
    %318 = vmatpush.msra.mxu0 0.0
    %319 = vmatpush.msra.mxu0 0.0
    %320 = vmatpush.msra.mxu0 0.0
    %v321 = vand.u32 %v161, 4294901760
    %v322 = vsub.f32 %v161, %v321
    %323 = vmatpush.msra.mxu0 %v322
    %v324 = vand.u32 %v160, 4294901760
    %v325 = vsub.f32 %v160, %v324
    %326 = vmatpush.msra.mxu0 %v325
    %v327 = vand.u32 %v159, 4294901760
    %v328 = vsub.f32 %v159, %v327
    %329 = vmatpush.msra.mxu0 %v328
    %v330 = vand.u32 %v158, 4294901760
    %v331 = vsub.f32 %v158, %v330
    %332 = vmatpush.msra.mxu0 %v331
    %v333 = vand.u32 %v192, 4294901760
    %v334 = vsub.f32 %v192, %v333
    %335 = vmatmul.f32.gmra.mxu0 %v334
    %v336 = vpop.f32.mrf.mxu0
    %v337 = vadd.f32 %v295, %v336
    %v338 = vand.u32 %v195, 4294901760
    %v339 = vsub.f32 %v195, %v338
    %340 = vmatmul.f32.gmra.mxu0 %v339
    %v341 = vpop.f32.mrf.mxu0
    %v342 = vadd.f32 %v299, %v341
    %v343 = vand.u32 %v198, 4294901760
    %v344 = vsub.f32 %v198, %v343
    %345 = vmatmul.f32.gmra.mxu0 %v344
    %v346 = vpop.f32.mrf.mxu0
    %v347 = vadd.f32 %v303, %v346
    %v348 = vand.u32 %v201, 4294901760
    %v349 = vsub.f32 %v201, %v348
    %350 = vmatmul.f32.gmra.mxu0 %v349
    %v351 = vpop.f32.mrf.mxu0
    %v352 = vadd.f32 %v307, %v351
    %353 = vdwg.mxu0
    %354 = vmatpush.msra.mxu0 0.0
    %355 = vmatpush.msra.mxu0 0.0
    %356 = vmatpush.msra.mxu0 0.0
    %357 = vmatpush.msra.mxu0 0.0
    %358 = vmatpush.msra.mxu0 0.0
    %359 = vmatpush.msra.mxu0 0.0
    %360 = vmatpush.msra.mxu0 0.0
    %361 = vmatpush.msra.mxu0 0.0
    %362 = vmatpush.msra.mxu0 0.0
    %363 = vmatpush.msra.mxu0 0.0
    %364 = vmatpush.msra.mxu0 0.0
    %365 = vmatpush.msra.mxu0 0.0
    %v366 = vand.u32 %v161, 4294901760
    %367 = vmatpush.msra.mxu0 %v366
    %v368 = vand.u32 %v160, 4294901760
    %369 = vmatpush.msra.mxu0 %v368
    %v370 = vand.u32 %v159, 4294901760
    %371 = vmatpush.msra.mxu0 %v370
    %v372 = vand.u32 %v158, 4294901760
    %373 = vmatpush.msra.mxu0 %v372
    %v374 = vand.u32 %v192, 4294901760
    %v375 = vsub.f32 %v192, %v374
    %v376 = vand.u32 %v375, 4294901760
    %377 = vmatmul.f32.gmra.mxu0 %v376
    %v378 = vpop.f32.mrf.mxu0
    %v379 = vadd.f32 %v337, %v378
    %v380 = vand.u32 %v195, 4294901760
    %v381 = vsub.f32 %v195, %v380
    %v382 = vand.u32 %v381, 4294901760
    %383 = vmatmul.f32.gmra.mxu0 %v382
    %v384 = vpop.f32.mrf.mxu0
    %v385 = vadd.f32 %v342, %v384
    %v386 = vand.u32 %v198, 4294901760
    %v387 = vsub.f32 %v198, %v386
    %v388 = vand.u32 %v387, 4294901760
    %389 = vmatmul.f32.gmra.mxu0 %v388
    %v390 = vpop.f32.mrf.mxu0
    %v391 = vadd.f32 %v347, %v390
    %v392 = vand.u32 %v201, 4294901760
    %v393 = vsub.f32 %v201, %v392
    %v394 = vand.u32 %v393, 4294901760
    %395 = vmatmul.f32.gmra.mxu0 %v394
    %v396 = vpop.f32.mrf.mxu0
    %v397 = vadd.f32 %v352, %v396
    %398 = vdwg.mxu0
    %399 = vmatpush.msra.mxu0 0.0
    %400 = vmatpush.msra.mxu0 0.0
    %401 = vmatpush.msra.mxu0 0.0
    %402 = vmatpush.msra.mxu0 0.0
    %403 = vmatpush.msra.mxu0 0.0
    %404 = vmatpush.msra.mxu0 0.0
    %405 = vmatpush.msra.mxu0 0.0
    %406 = vmatpush.msra.mxu0 0.0
    %407 = vmatpush.msra.mxu0 0.0
    %408 = vmatpush.msra.mxu0 0.0
    %409 = vmatpush.msra.mxu0 0.0
    %410 = vmatpush.msra.mxu0 0.0
    %v411 = vand.u32 %v161, 4294901760
    %v412 = vsub.f32 %v161, %v411
    %v413 = vand.u32 %v412, 4294901760
    %414 = vmatpush.msra.mxu0 %v413
    %v415 = vand.u32 %v160, 4294901760
    %v416 = vsub.f32 %v160, %v415
    %v417 = vand.u32 %v416, 4294901760
    %418 = vmatpush.msra.mxu0 %v417
    %v419 = vand.u32 %v159, 4294901760
    %v420 = vsub.f32 %v159, %v419
    %v421 = vand.u32 %v420, 4294901760
    %422 = vmatpush.msra.mxu0 %v421
    %v423 = vand.u32 %v158, 4294901760
    %v424 = vsub.f32 %v158, %v423
    %v425 = vand.u32 %v424, 4294901760
    %426 = vmatpush.msra.mxu0 %v425
    %v427 = vand.u32 %v192, 4294901760
    %428 = vmatmul.f32.gmra.mxu0 %v427
    %v429 = vpop.f32.mrf.mxu0
    %v430 = vadd.f32 %v379, %v429
    %v431 = vand.u32 %v195, 4294901760
    %432 = vmatmul.f32.gmra.mxu0 %v431
    %v433 = vpop.f32.mrf.mxu0
    %v434 = vadd.f32 %v385, %v433
    %v435 = vand.u32 %v198, 4294901760
    %436 = vmatmul.f32.gmra.mxu0 %v435
    %v437 = vpop.f32.mrf.mxu0
    %v438 = vadd.f32 %v391, %v437
    %v439 = vand.u32 %v201, 4294901760
    %440 = vmatmul.f32.gmra.mxu0 %v439
    %v441 = vpop.f32.mrf.mxu0
    %v442 = vadd.f32 %v397, %v441
    %443 = vdwg.mxu0
    %444 = vmatpush.msra.mxu0 0.0
    %445 = vmatpush.msra.mxu0 0.0
    %446 = vmatpush.msra.mxu0 0.0
    %447 = vmatpush.msra.mxu0 0.0
    %448 = vmatpush.msra.mxu0 0.0
    %449 = vmatpush.msra.mxu0 0.0
    %450 = vmatpush.msra.mxu0 0.0
    %451 = vmatpush.msra.mxu0 0.0
    %452 = vmatpush.msra.mxu0 0.0
    %453 = vmatpush.msra.mxu0 0.0
    %454 = vmatpush.msra.mxu0 0.0
    %455 = vmatpush.msra.mxu0 0.0
    %v456 = vand.u32 %v161, 4294901760
    %457 = vmatpush.msra.mxu0 %v456
    %v458 = vand.u32 %v160, 4294901760
    %459 = vmatpush.msra.mxu0 %v458
    %v460 = vand.u32 %v159, 4294901760
    %461 = vmatpush.msra.mxu0 %v460
    %v462 = vand.u32 %v158, 4294901760
    %463 = vmatpush.msra.mxu0 %v462
    %v464 = vand.u32 %v192, 4294901760
    %465 = vmatmul.f32.gmra.mxu0 %v464
    %v466 = vpop.f32.mrf.mxu0
    %v467 = vadd.f32 %v430, %v466
    %v468 = vand.u32 %v195, 4294901760
    %469 = vmatmul.f32.gmra.mxu0 %v468
    %v470 = vpop.f32.mrf.mxu0
    %v471 = vadd.f32 %v434, %v470
    %v472 = vand.u32 %v198, 4294901760
    %473 = vmatmul.f32.gmra.mxu0 %v472
    %v474 = vpop.f32.mrf.mxu0
    %v475 = vadd.f32 %v438, %v474
    %v476 = vand.u32 %v201, 4294901760
    %477 = vmatmul.f32.gmra.mxu0 %v476
    %v478 = vpop.f32.mrf.mxu0
    %v479 = vadd.f32 %v442, %v478
    %480 = vdwg.mxu0
    %v481 = vmax.f32 %v467, 0.0
    %v482 = vmax.f32 %v471, 0.0
    %v483 = vmax.f32 %v475, 0.0
    %v484 = vmax.f32 %v479, 0.0
    %v485 = vld [vmem:[%s5] sm:$0xff]
    %v486 = vld [vmem:[%s5 + $0x8] sm:$0xff]
    %v487 = vld [vmem:[%s5 + $0x10] sm:$0xff]
    %v488 = vld [vmem:[%s5 + $0x18] sm:$0xff]
    %490 = vset.pattern.permute.xlu0 0
    %491 = vperm.xlu0 %490, %v485
    %v492 = vpop.permute.xlu0 %491
    %495 = vset.pattern.permute.xlu0 0
    %496 = vperm.xlu0 %495, %v486
    %v497 = vpop.permute.xlu0 %496
    %500 = vset.pattern.permute.xlu0 0
    %501 = vperm.xlu0 %500, %v487
    %v502 = vpop.permute.xlu0 %501
    %505 = vset.pattern.permute.xlu0 0
    %506 = vperm.xlu0 %505, %v488
    %v507 = vpop.permute.xlu0 %506
    %v509 = vmul.f32 %v492, %v481
    %v510 = vmul.f32 %v497, %v482
    %v511 = vmul.f32 %v502, %v483
    %v512 = vmul.f32 %v507, %v484
    %v513 = vadd.f32 %v509, %v510
    %v514 = vadd.f32 %v513, %v511
    %v515 = vadd.f32 %v514, %v512
    %v516 = vrot.slane %v515, 4
    %v517 = vadd.f32 %v515, %v516
    %v518 = vrot.slane %v517, 2
    %v519 = vadd.f32 %v517, %v518
    %v520 = vrot.slane %v519, 1
    %v521 = vadd.f32 %v519, %v520
    %s522 = sld [smem:[#allocation2]]
    %v523 = vstv %s522
    %v524 = vadd.f32 %v521, %v523
    %v525 = vxor.u32 %v524, 2147483648
    %v526 = vmul.f32 %v525, 1.442695
    %v527 = vpow.pop %v526
    %v528 = vadd.f32 %v527, 1.0
    %v529 = vrcp.pop %v528
    %v530 = vmul.f32 %v528, %v529
    %v531 = vsub.f32 1.0, %v530
    %v532 = vmul.f32 %v529, %v531
    %v533 = vadd.f32 %v529, %v532
    %vm534 = vweird.f32 %v528
    %vm535 = vweird.f32 %v529
    %vm536 = vmor %vm534, %vm535
    %v537 = vsel %vm536, %v529, %v533
    %v538 = vand.u32 2147483647, %v528
    %vm539 = vcmp.eq.f32.partialorder %v538, 8.507059e+37
    %v540 = vand.u32 %v528, 2147483648
    %v541 = vor.u32 1.1754944e-38, %v540
    %v542 = vsel %vm539, %v541, %v537
    %v543 = vmul.f32 1.0, %v542
    %544 = vst [vmem:[#allocation3] sm:$0x1] %v543
    // Predicated region
    $region30: #{tpu_custom_call.1} parent=1 // pred_check
      _
    $region31: #{tpu_custom_call.1} parent=1 // pred_check_branch
      %546 = sbr.rel (0) target = $region33
    $region32: #{tpu_custom_call.1} parent=1 // pred_region
      %548 = vsyncadd [#allocation4], 0
      %s550 = sshll.u32 [#allocation3], 4
      %s551 = int_to_ptr.vmem [resolvable:$true] %s550
      %s552 = sshll.u32 %s7, 4
      %s553 = int_to_ptr.hbm [resolvable:$true] %s552
      %555 = dma.vmem_to_hbm [thread:$0]  %s551, 16, %s553, [#allocation4]
    $region33: #{tpu_custom_call.1} parent=1 // pred_fallthru
      _
    // Predicated region
    $region34: #{tpu_custom_call.1} parent=1 // pred_check
      _
    $region35: #{tpu_custom_call.1} parent=1 // pred_check_branch
      %557 = sbr.rel (0) target = $region37
    $region36: #{tpu_custom_call.1} parent=1 // pred_region
      %559 = dma.done [#allocation4], 16
    $region37: #{tpu_custom_call.1} parent=1 // pred_fallthru
      _
    %560 = vsyncpa [#allocation4], 1

</llo_original>
